<compile_context>
chip_gen: v6e
topology: v6e:2x2x1
jax: 0.10.0
libtpu: 0.0.40
codegen_flags: <defaults>
</compile_context>

<pallas_src>
import functools

import jax
import jax.numpy as jnp
from jax import lax
from jax.experimental import pallas as pl
from jax.experimental.pallas import tpu as pltpu


# --------------------------------------------------------------------------
# Kernel 1: fused QKV projection + head split  (x -> q, k, v in (B, H, N, D))
# --------------------------------------------------------------------------
def _qkv_proj_kernel(x_ref, w_ref, b_ref, q_ref, k_ref, v_ref, *,
                     num_heads, head_dim):
    E = num_heads * head_dim
    x = x_ref[0].astype(jnp.bfloat16)                       # (tn, E)
    # Weight columns pre-permuted to [q | k | v], each head-major (h, d).
    qkv = jnp.dot(x, w_ref[...], preferred_element_type=jnp.float32)
    qkv = (qkv + b_ref[...]).astype(jnp.bfloat16)           # (tn, 3E)
    for h in range(num_heads):                               # static unroll, H small
        lo = h * head_dim
        hi = lo + head_dim
        q_ref[0, h] = qkv[:, lo:hi]
        k_ref[0, h] = qkv[:, E + lo:E + hi]
        v_ref[0, h] = qkv[:, 2 * E + lo:2 * E + hi]


# --------------------------------------------------------------------------
# Kernel 2: flash attention (online softmax over kv tiles) + output projection
# --------------------------------------------------------------------------
def _flash_attn_kernel(q_ref, k_ref, v_ref, wp_ref, bp_ref, o_ref,
                       m_scr, l_scr, acc_scr, *, kv_tiles, inv_scale):
    h = pl.program_id(2)
    kt = pl.program_id(3)

    @pl.when(kt == 0)
    def _init():
        m_scr[...] = jnp.full_like(m_scr, -jnp.inf)
        l_scr[...] = jnp.zeros_like(l_scr)
        acc_scr[...] = jnp.zeros_like(acc_scr)

    q = q_ref[0, 0]                                          # (tq, D) bf16
    k = k_ref[0, 0]                                          # (tk, D) bf16
    v = v_ref[0, 0]                                          # (tk, D) bf16

    # energy tile: q @ k^T, contracting last dims, f32 accumulation on the MXU.
    s = lax.dot_general(q, k, (((1,), (1,)), ((), ())),
                        preferred_element_type=jnp.float32)  # (tq, tk)

    # online softmax update, state carried in f32 VMEM scratch
    m_prev = m_scr[...]
    m_new = jnp.maximum(m_prev, jnp.max(s, axis=-1, keepdims=True))
    alpha = jnp.exp(m_prev - m_new)
    p = jnp.exp(s - m_new)                                   # f32 (v5e-safe)
    l_scr[...] = alpha * l_scr[...] + jnp.sum(p, axis=-1, keepdims=True)
    acc_scr[...] = alpha * acc_scr[...] + jnp.dot(
        p.astype(jnp.bfloat16), v, preferred_element_type=jnp.float32)
    m_scr[...] = m_new

    @pl.when(kt == kv_tiles - 1)
    def _finalize():
        # normalization + the module's post-softmax 1/sqrt(E) scale, folded in.
        inv_l = pl.reciprocal(l_scr[...], approx=True)       # (tq, 1), EUP
        ctx = acc_scr[...] * (inv_l * inv_scale)             # (tq, D) f32
        # 'b h n d -> b n (h d)' + projection fused: this head's contribution
        # accumulated into the VMEM-resident lane-dense (tq, E) output block.
        contrib = jnp.dot(ctx.astype(jnp.bfloat16), wp_ref[0],
                          preferred_element_type=jnp.float32)  # (tq, E)

        @pl.when(h == 0)
        def _first():
            o_ref[0] = (contrib + bp_ref[...]).astype(o_ref.dtype)

        @pl.when(h > 0)
        def _rest():
            o_ref[0] = o_ref[0] + contrib.astype(o_ref.dtype)


# --------------------------------------------------------------------------
# Host-side parameter preparation (one-time, hoisted out of the forward pass)
# --------------------------------------------------------------------------
def _qkv_column_permutation(num_heads, head_dim):
    """new column s*E + h*D + d  <-  old column h*(3D) + 3d + s (einops order)."""
    perm = []
    for s in range(3):                 # 0=q, 1=k, 2=v (qkv fastest in original)
        for h in range(num_heads):
            for d in range(head_dim):
                perm.append(h * head_dim * 3 + d * 3 + s)
    return jnp.asarray(perm, dtype=jnp.int32)


def prepare_params(params, num_heads):
    """Permute qkv columns, split W_proj per head, cast weights to bf16."""
    E = params["w_proj"].shape[0]
    D = E // num_heads
    perm = _qkv_column_permutation(num_heads, D)
    return {
        "w_qkv": jnp.take(params["w_qkv"], perm, axis=1).astype(jnp.bfloat16),
        "b_qkv": jnp.take(params["b_qkv"], perm, axis=0)
                    .reshape(1, 3 * E).astype(jnp.float32),
        "w_proj_heads": params["w_proj"].reshape(num_heads, D, E)
                             .astype(jnp.bfloat16),
        "b_proj": params["b_proj"].reshape(1, E).astype(jnp.float32),
    }


def _pick_tile(n, target):
    if n <= target:
        return n
    assert n % target == 0, f"N={n} must be a multiple of {target}"
    return target


# --------------------------------------------------------------------------
# Forward pass
# --------------------------------------------------------------------------
def multi_head_attention(x, prepared, num_heads, *, tn=256, tq=256, tk=512):
    """x: (B, N, E) float32; prepared = prepare_params(params, num_heads)."""
    B, N, E = x.shape
    H = num_heads
    D = E // H
    inv_scale = 1.0 / (float(E) ** 0.5)

    tn = _pick_tile(N, tn)           # token tiles capped for v7x's 64 MiB VMEM
    tq = _pick_tile(N, tq)
    tk = _pick_tile(N, tk)
    n_tiles, q_tiles, kv_tiles = N // tn, N // tq, N // tk

    vmem_limit = 64 * 1024 * 1024

    # ---- kernel 1: QKV projection -> per-head (B, H, N, D) q / k / v ----
    qkv_kernel = functools.partial(_qkv_proj_kernel, num_heads=H, head_dim=D)
    q, k, v = pl.pallas_call(
        qkv_kernel,
        out_shape=(
            jax.ShapeDtypeStruct((B, H, N, D), jnp.bfloat16),
            jax.ShapeDtypeStruct((B, H, N, D), jnp.bfloat16),
            jax.ShapeDtypeStruct((B, H, N, D), jnp.bfloat16),
        ),
        grid=(B, n_tiles),
        in_specs=[
            pl.BlockSpec((1, tn, E), lambda b, t: (b, t, 0)),       # x tile
            pl.BlockSpec(memory_space=pltpu.MemorySpace.VMEM),      # w_qkv resident
            pl.BlockSpec(memory_space=pltpu.MemorySpace.VMEM),      # b_qkv resident
        ],
        out_specs=(
            pl.BlockSpec((1, H, tn, D), lambda b, t: (b, 0, t, 0)),
            pl.BlockSpec((1, H, tn, D), lambda b, t: (b, 0, t, 0)),
            pl.BlockSpec((1, H, tn, D), lambda b, t: (b, 0, t, 0)),
        ),
        compiler_params=pltpu.CompilerParams(
            dimension_semantics=("parallel", "parallel"),
            vmem_limit_bytes=vmem_limit),
    )(x, prepared["w_qkv"], prepared["b_qkv"])

    # ---- kernel 2: flash attention + fused output projection ----
    attn_kernel = functools.partial(_flash_attn_kernel,
                                    kv_tiles=kv_tiles, inv_scale=inv_scale)
    out = pl.pallas_call(
        attn_kernel,
        out_shape=jax.ShapeDtypeStruct((B, N, E), x.dtype),
        grid=(B, q_tiles, H, kv_tiles),
        in_specs=[
            pl.BlockSpec((1, 1, tq, D), lambda b, qi, h, kt: (b, h, qi, 0)),  # q
            pl.BlockSpec((1, 1, tk, D), lambda b, qi, h, kt: (b, h, kt, 0)),  # k
            pl.BlockSpec((1, 1, tk, D), lambda b, qi, h, kt: (b, h, kt, 0)),  # v
            pl.BlockSpec((1, D, E),     lambda b, qi, h, kt: (h, 0, 0)),      # W_proj[h]
            pl.BlockSpec(memory_space=pltpu.MemorySpace.VMEM),                # b_proj
        ],
        out_specs=pl.BlockSpec((1, tq, E), lambda b, qi, h, kt: (b, qi, 0)),
        scratch_shapes=[
            pltpu.VMEM((tq, 1), jnp.float32),    # m  (running max)
            pltpu.VMEM((tq, 1), jnp.float32),    # l  (running denom)
            pltpu.VMEM((tq, D), jnp.float32),    # acc (running context)
        ],
        compiler_params=pltpu.CompilerParams(
            dimension_semantics=("parallel", "parallel", "arbitrary", "arbitrary"),
            vmem_limit_bytes=vmem_limit),
    )(q, k, v, prepared["w_proj_heads"], prepared["b_proj"])

    return out


# --------------------------------------------------------------------------
# Pure-JAX reference (f32, mirrors the PyTorch module exactly)
# --------------------------------------------------------------------------
def reference_mha(x, params, num_heads):
    B, N, E = x.shape
    H = num_heads
    D = E // H
    qkv = x @ params["w_qkv"] + params["b_qkv"]
    qkv = qkv.reshape(B, N, H, D, 3)
    qkv = jnp.transpose(qkv, (4, 0, 2, 1, 3))             # (3, B, H, N, D)
    q, k, v = qkv[0], qkv[1], qkv[2]
    energy = jnp.einsum("bhqd,bhkd->bhqk", q, k)
    att = jax.nn.softmax(energy, axis=-1) / (E ** 0.5)
    out = jnp.einsum("bhal,bhlv->bhav", att, v)
    out = jnp.transpose(out, (0, 2, 1, 3)).reshape(B, N, E)
    return out @ params["w_proj"] + params["b_proj"]


# --------------------------------------------------------------------------
# Main
# --------------------------------------------------------------------------
if __name__ == "__main__":
    B, N, E, H = 2, 16, 32, 4   # small shapes consistent with the module

    key = jax.random.PRNGKey(0)
    k_x, k_wq, k_bq, k_wp, k_bp = jax.random.split(key, 5)

    x = jax.random.normal(k_x, (B, N, E), dtype=jnp.float32)

    # deterministic synthetic parameters (Linear: weight (in,out), bias (out,))
    params = {
        "w_qkv": jax.random.normal(k_wq, (E, 3 * E), dtype=jnp.float32) * 0.05,
        "b_qkv": jax.random.normal(k_bq, (3 * E,), dtype=jnp.float32) * 0.05,
        "w_proj": jax.random.normal(k_wp, (E, E), dtype=jnp.float32) * 0.05,
        "b_proj": jax.random.normal(k_bp, (E,), dtype=jnp.float32) * 0.05,
    }

    prepared = prepare_params(params, num_heads=H)     # one-time param prep
    out = jax.block_until_ready(multi_head_attention(x, prepared, num_heads=H))

    ref = jax.block_until_ready(reference_mha(x, params, num_heads=H))
    assert out.shape == (B, N, E)
    # bf16 matmul operands (f32 accumulation) + approx reciprocal -> bf16-level tol
    max_err = float(jnp.max(jnp.abs(out - ref)))
    assert jnp.allclose(out, ref, rtol=1e-2, atol=1e-2), \
        f"mismatch vs reference (max |err| = {max_err})"

    print("KERNEL_OK")
</pallas_src>

<mosaic_0001>
module attributes {stable_mosaic.version = 11 : i64} {
  func.func @_qkv_proj_kernel(%arg0: i32, %arg1: i32, %arg2: memref<1x16x32xf32, #tpu.memory_space<vmem>>, %arg3: memref<32x96xbf16, #tpu.memory_space<vmem>>, %arg4: memref<1x96xf32, #tpu.memory_space<vmem>>, %arg5: memref<1x4x16x8xbf16, #tpu.memory_space<vmem>>, %arg6: memref<1x4x16x8xbf16, #tpu.memory_space<vmem>>, %arg7: memref<1x4x16x8xbf16, #tpu.memory_space<vmem>>) attributes {dimension_semantics = [#tpu.dimension_semantics<parallel>, #tpu.dimension_semantics<parallel>], iteration_bounds = array<i64: 2, 1>, scalar_prefetch = 0 : i64, scratch_operands = 0 : i64, tpu.core_type = #tpu.core_type<tc>, window_params = [{transform_indices = @transform_0, window_bounds = array<i64: 1, 16, 32>}, {pipeline_mode = #tpu.pipeline_mode<synchronous>, transform_indices = @transform_1, window_bounds = array<i64: 32, 96>}, {pipeline_mode = #tpu.pipeline_mode<synchronous>, transform_indices = @transform_2, window_bounds = array<i64: 1, 96>}, {transform_indices = @transform_3, window_bounds = array<i64: 1, 4, 16, 8>}, {transform_indices = @transform_4, window_bounds = array<i64: 1, 4, 16, 8>}, {transform_indices = @transform_5, window_bounds = array<i64: 1, 4, 16, 8>}]} {
    %c0 = arith.constant 0 : index
    %c0_0 = arith.constant 0 : index
    %c0_1 = arith.constant 0 : index
    %0 = vector.load %arg2[%c0, %c0_0, %c0_1] : memref<1x16x32xf32, #tpu.memory_space<vmem>>, vector<1x16x32xf32>
    %1 = vector.shape_cast %0 : vector<1x16x32xf32> to vector<16x32xf32>
    %2 = arith.truncf %1 : vector<16x32xf32> to vector<16x32xbf16>
    %c0_2 = arith.constant 0 : index
    %c0_3 = arith.constant 0 : index
    %3 = vector.load %arg3[%c0_2, %c0_3] : memref<32x96xbf16, #tpu.memory_space<vmem>>, vector<32x96xbf16>
    %cst = arith.constant dense<0.000000e+00> : vector<16x96xf32>
    %4 = tpu.matmul %2, %3, %cst {dimension_numbers = #tpu.dot_dimension_numbers<[1], [0], [0], [1], [0, 0, 1, 1], [], []>} : vector<16x32xbf16>, vector<32x96xbf16>, vector<16x96xf32> -> vector<16x96xf32>
    %c0_4 = arith.constant 0 : index
    %c0_5 = arith.constant 0 : index
    %5 = vector.load %arg4[%c0_4, %c0_5] : memref<1x96xf32, #tpu.memory_space<vmem>>, vector<1x96xf32>
    %6 = vector.broadcast %5 : vector<1x96xf32> to vector<16x96xf32>
    %7 = arith.addf %4, %6 : vector<16x96xf32>
    %8 = arith.truncf %7 : vector<16x96xf32> to vector<16x96xbf16>
    %9 = vector.extract_strided_slice %8 {offsets = [0, 0], sizes = [16, 8], strides = [1, 1]} : vector<16x96xbf16> to vector<16x8xbf16>
    %c0_6 = arith.constant 0 : index
    %c0_7 = arith.constant 0 : index
    %c0_8 = arith.constant 0 : index
    %c0_9 = arith.constant 0 : index
    %10 = vector.load %arg5[%c0_6, %c0_7, %c0_8, %c0_9] : memref<1x4x16x8xbf16, #tpu.memory_space<vmem>>, vector<1x1x16x8xbf16>
    %11 = vector.shape_cast %10 : vector<1x1x16x8xbf16> to vector<16x8xbf16>
    %12 = vector.shape_cast %9 : vector<16x8xbf16> to vector<1x1x16x8xbf16>
    tpu.vector_store %arg5[%c0_6, %c0_7, %c0_8, %c0_9], %12 {strides = array<i32>} : memref<1x4x16x8xbf16, #tpu.memory_space<vmem>>, vector<1x1x16x8xbf16>,
    %13 = vector.extract_strided_slice %8 {offsets = [0, 32], sizes = [16, 8], strides = [1, 1]} : vector<16x96xbf16> to vector<16x8xbf16>
    %c0_10 = arith.constant 0 : index
    %c0_11 = arith.constant 0 : index
    %c0_12 = arith.constant 0 : index
    %c0_13 = arith.constant 0 : index
    %14 = vector.load %arg6[%c0_10, %c0_11, %c0_12, %c0_13] : memref<1x4x16x8xbf16, #tpu.memory_space<vmem>>, vector<1x1x16x8xbf16>
    %15 = vector.shape_cast %14 : vector<1x1x16x8xbf16> to vector<16x8xbf16>
    %16 = vector.shape_cast %13 : vector<16x8xbf16> to vector<1x1x16x8xbf16>
    tpu.vector_store %arg6[%c0_10, %c0_11, %c0_12, %c0_13], %16 {strides = array<i32>} : memref<1x4x16x8xbf16, #tpu.memory_space<vmem>>, vector<1x1x16x8xbf16>,
    %17 = vector.extract_strided_slice %8 {offsets = [0, 64], sizes = [16, 8], strides = [1, 1]} : vector<16x96xbf16> to vector<16x8xbf16>
    %c0_14 = arith.constant 0 : index
    %c0_15 = arith.constant 0 : index
    %c0_16 = arith.constant 0 : index
    %c0_17 = arith.constant 0 : index
    %18 = vector.load %arg7[%c0_14, %c0_15, %c0_16, %c0_17] : memref<1x4x16x8xbf16, #tpu.memory_space<vmem>>, vector<1x1x16x8xbf16>
    %19 = vector.shape_cast %18 : vector<1x1x16x8xbf16> to vector<16x8xbf16>
    %20 = vector.shape_cast %17 : vector<16x8xbf16> to vector<1x1x16x8xbf16>
    tpu.vector_store %arg7[%c0_14, %c0_15, %c0_16, %c0_17], %20 {strides = array<i32>} : memref<1x4x16x8xbf16, #tpu.memory_space<vmem>>, vector<1x1x16x8xbf16>,
    %21 = vector.extract_strided_slice %8 {offsets = [0, 8], sizes = [16, 8], strides = [1, 1]} : vector<16x96xbf16> to vector<16x8xbf16>
    %c0_18 = arith.constant 0 : index
    %c1 = arith.constant 1 : index
    %c0_19 = arith.constant 0 : index
    %c0_20 = arith.constant 0 : index
    %22 = vector.load %arg5[%c0_18, %c1, %c0_19, %c0_20] : memref<1x4x16x8xbf16, #tpu.memory_space<vmem>>, vector<1x1x16x8xbf16>
    %23 = vector.shape_cast %22 : vector<1x1x16x8xbf16> to vector<16x8xbf16>
    %24 = vector.shape_cast %21 : vector<16x8xbf16> to vector<1x1x16x8xbf16>
    tpu.vector_store %arg5[%c0_18, %c1, %c0_19, %c0_20], %24 {strides = array<i32>} : memref<1x4x16x8xbf16, #tpu.memory_space<vmem>>, vector<1x1x16x8xbf16>,
    %25 = vector.extract_strided_slice %8 {offsets = [0, 40], sizes = [16, 8], strides = [1, 1]} : vector<16x96xbf16> to vector<16x8xbf16>
    %c0_21 = arith.constant 0 : index
    %c1_22 = arith.constant 1 : index
    %c0_23 = arith.constant 0 : index
    %c0_24 = arith.constant 0 : index
    %26 = vector.load %arg6[%c0_21, %c1_22, %c0_23, %c0_24] : memref<1x4x16x8xbf16, #tpu.memory_space<vmem>>, vector<1x1x16x8xbf16>
    %27 = vector.shape_cast %26 : vector<1x1x16x8xbf16> to vector<16x8xbf16>
    %28 = vector.shape_cast %25 : vector<16x8xbf16> to vector<1x1x16x8xbf16>
    tpu.vector_store %arg6[%c0_21, %c1_22, %c0_23, %c0_24], %28 {strides = array<i32>} : memref<1x4x16x8xbf16, #tpu.memory_space<vmem>>, vector<1x1x16x8xbf16>,
    %29 = vector.extract_strided_slice %8 {offsets = [0, 72], sizes = [16, 8], strides = [1, 1]} : vector<16x96xbf16> to vector<16x8xbf16>
    %c0_25 = arith.constant 0 : index
    %c1_26 = arith.constant 1 : index
    %c0_27 = arith.constant 0 : index
    %c0_28 = arith.constant 0 : index
    %30 = vector.load %arg7[%c0_25, %c1_26, %c0_27, %c0_28] : memref<1x4x16x8xbf16, #tpu.memory_space<vmem>>, vector<1x1x16x8xbf16>
    %31 = vector.shape_cast %30 : vector<1x1x16x8xbf16> to vector<16x8xbf16>
    %32 = vector.shape_cast %29 : vector<16x8xbf16> to vector<1x1x16x8xbf16>
    tpu.vector_store %arg7[%c0_25, %c1_26, %c0_27, %c0_28], %32 {strides = array<i32>} : memref<1x4x16x8xbf16, #tpu.memory_space<vmem>>, vector<1x1x16x8xbf16>,
    %33 = vector.extract_strided_slice %8 {offsets = [0, 16], sizes = [16, 8], strides = [1, 1]} : vector<16x96xbf16> to vector<16x8xbf16>
    %c0_29 = arith.constant 0 : index
    %c2 = arith.constant 2 : index
    %c0_30 = arith.constant 0 : index
    %c0_31 = arith.constant 0 : index
    %34 = vector.load %arg5[%c0_29, %c2, %c0_30, %c0_31] : memref<1x4x16x8xbf16, #tpu.memory_space<vmem>>, vector<1x1x16x8xbf16>
    %35 = vector.shape_cast %34 : vector<1x1x16x8xbf16> to vector<16x8xbf16>
    %36 = vector.shape_cast %33 : vector<16x8xbf16> to vector<1x1x16x8xbf16>
    tpu.vector_store %arg5[%c0_29, %c2, %c0_30, %c0_31], %36 {strides = array<i32>} : memref<1x4x16x8xbf16, #tpu.memory_space<vmem>>, vector<1x1x16x8xbf16>,
    %37 = vector.extract_strided_slice %8 {offsets = [0, 48], sizes = [16, 8], strides = [1, 1]} : vector<16x96xbf16> to vector<16x8xbf16>
    %c0_32 = arith.constant 0 : index
    %c2_33 = arith.constant 2 : index
    %c0_34 = arith.constant 0 : index
    %c0_35 = arith.constant 0 : index
    %38 = vector.load %arg6[%c0_32, %c2_33, %c0_34, %c0_35] : memref<1x4x16x8xbf16, #tpu.memory_space<vmem>>, vector<1x1x16x8xbf16>
    %39 = vector.shape_cast %38 : vector<1x1x16x8xbf16> to vector<16x8xbf16>
    %40 = vector.shape_cast %37 : vector<16x8xbf16> to vector<1x1x16x8xbf16>
    tpu.vector_store %arg6[%c0_32, %c2_33, %c0_34, %c0_35], %40 {strides = array<i32>} : memref<1x4x16x8xbf16, #tpu.memory_space<vmem>>, vector<1x1x16x8xbf16>,
    %41 = vector.extract_strided_slice %8 {offsets = [0, 80], sizes = [16, 8], strides = [1, 1]} : vector<16x96xbf16> to vector<16x8xbf16>
    %c0_36 = arith.constant 0 : index
    %c2_37 = arith.constant 2 : index
    %c0_38 = arith.constant 0 : index
    %c0_39 = arith.constant 0 : index
    %42 = vector.load %arg7[%c0_36, %c2_37, %c0_38, %c0_39] : memref<1x4x16x8xbf16, #tpu.memory_space<vmem>>, vector<1x1x16x8xbf16>
    %43 = vector.shape_cast %42 : vector<1x1x16x8xbf16> to vector<16x8xbf16>
    %44 = vector.shape_cast %41 : vector<16x8xbf16> to vector<1x1x16x8xbf16>
    tpu.vector_store %arg7[%c0_36, %c2_37, %c0_38, %c0_39], %44 {strides = array<i32>} : memref<1x4x16x8xbf16, #tpu.memory_space<vmem>>, vector<1x1x16x8xbf16>,
    %45 = vector.extract_strided_slice %8 {offsets = [0, 24], sizes = [16, 8], strides = [1, 1]} : vector<16x96xbf16> to vector<16x8xbf16>
    %c0_40 = arith.constant 0 : index
    %c3 = arith.constant 3 : index
    %c0_41 = arith.constant 0 : index
    %c0_42 = arith.constant 0 : index
    %46 = vector.load %arg5[%c0_40, %c3, %c0_41, %c0_42] : memref<1x4x16x8xbf16, #tpu.memory_space<vmem>>, vector<1x1x16x8xbf16>
    %47 = vector.shape_cast %46 : vector<1x1x16x8xbf16> to vector<16x8xbf16>
    %48 = vector.shape_cast %45 : vector<16x8xbf16> to vector<1x1x16x8xbf16>
    tpu.vector_store %arg5[%c0_40, %c3, %c0_41, %c0_42], %48 {strides = array<i32>} : memref<1x4x16x8xbf16, #tpu.memory_space<vmem>>, vector<1x1x16x8xbf16>,
    %49 = vector.extract_strided_slice %8 {offsets = [0, 56], sizes = [16, 8], strides = [1, 1]} : vector<16x96xbf16> to vector<16x8xbf16>
    %c0_43 = arith.constant 0 : index
    %c3_44 = arith.constant 3 : index
    %c0_45 = arith.constant 0 : index
    %c0_46 = arith.constant 0 : index
    %50 = vector.load %arg6[%c0_43, %c3_44, %c0_45, %c0_46] : memref<1x4x16x8xbf16, #tpu.memory_space<vmem>>, vector<1x1x16x8xbf16>
    %51 = vector.shape_cast %50 : vector<1x1x16x8xbf16> to vector<16x8xbf16>
    %52 = vector.shape_cast %49 : vector<16x8xbf16> to vector<1x1x16x8xbf16>
    tpu.vector_store %arg6[%c0_43, %c3_44, %c0_45, %c0_46], %52 {strides = array<i32>} : memref<1x4x16x8xbf16, #tpu.memory_space<vmem>>, vector<1x1x16x8xbf16>,
    %53 = vector.extract_strided_slice %8 {offsets = [0, 88], sizes = [16, 8], strides = [1, 1]} : vector<16x96xbf16> to vector<16x8xbf16>
    %c0_47 = arith.constant 0 : index
    %c3_48 = arith.constant 3 : index
    %c0_49 = arith.constant 0 : index
    %c0_50 = arith.constant 0 : index
    %54 = vector.load %arg7[%c0_47, %c3_48, %c0_49, %c0_50] : memref<1x4x16x8xbf16, #tpu.memory_space<vmem>>, vector<1x1x16x8xbf16>
    %55 = vector.shape_cast %54 : vector<1x1x16x8xbf16> to vector<16x8xbf16>
    %56 = vector.shape_cast %53 : vector<16x8xbf16> to vector<1x1x16x8xbf16>
    tpu.vector_store %arg7[%c0_47, %c3_48, %c0_49, %c0_50], %56 {strides = array<i32>} : memref<1x4x16x8xbf16, #tpu.memory_space<vmem>>, vector<1x1x16x8xbf16>,
    return
  }
  func.func @transform_0(%arg0: i32, %arg1: i32) -> (i32, i32, i32) {
    %c0_i32 = arith.constant 0 : i32
    %c0_i32_0 = arith.constant 0 : i32
    return %arg0, %arg1, %c0_i32 : i32, i32, i32
  }
  func.func @transform_1(%arg0: i32, %arg1: i32) -> (i32, i32) {
    %c0_i32 = arith.constant 0 : i32
    %c0_i32_0 = arith.constant 0 : i32
    %c0_i32_1 = arith.constant 0 : i32
    return %c0_i32, %c0_i32_0 : i32, i32
  }
  func.func @transform_2(%arg0: i32, %arg1: i32) -> (i32, i32) {
    %c0_i32 = arith.constant 0 : i32
    %c0_i32_0 = arith.constant 0 : i32
    %c0_i32_1 = arith.constant 0 : i32
    return %c0_i32, %c0_i32_0 : i32, i32
  }
  func.func @transform_3(%arg0: i32, %arg1: i32) -> (i32, i32, i32, i32) {
    %c0_i32 = arith.constant 0 : i32
    %c0_i32_0 = arith.constant 0 : i32
    %c0_i32_1 = arith.constant 0 : i32
    return %arg0, %c0_i32, %arg1, %c0_i32_0 : i32, i32, i32, i32
  }
  func.func @transform_4(%arg0: i32, %arg1: i32) -> (i32, i32, i32, i32) {
    %c0_i32 = arith.constant 0 : i32
    %c0_i32_0 = arith.constant 0 : i32
    %c0_i32_1 = arith.constant 0 : i32
    return %arg0, %c0_i32, %arg1, %c0_i32_0 : i32, i32, i32, i32
  }
  func.func @transform_5(%arg0: i32, %arg1: i32) -> (i32, i32, i32, i32) {
    %c0_i32 = arith.constant 0 : i32
    %c0_i32_0 = arith.constant 0 : i32
    %c0_i32_1 = arith.constant 0 : i32
    return %arg0, %c0_i32, %arg1, %c0_i32_0 : i32, i32, i32, i32
  }
}

</mosaic_0001>

<llo_original>
// kernel: tpu_custom_call.1
$region0: #{tpu_custom_call.1}
  #allocation0 [shape = 'u32[]', space=smem, size = 0x4, offset = 0x4, fixed_abs, tag = 'smem constant byte address 0x4 - core index']
  #allocation1 [shape = 'u32[144,128]{1,0:T(1,128)}', space=vmem, size = 0x12000, scoped, tag = 'internal scratch']
  %s0 = inlined_call_operand.hbm [shape: f32[2,16,32], index: 0, kind: input, shape index: {}]
  %s1 = inlined_call_operand.hbm [shape: bf16[32,96], index: 1, kind: input, shape index: {}]
  %s2 = inlined_call_operand.vmem [shape: f32[1,96], index: 2, kind: input, shape index: {}]
  %s3 = inlined_call_operand.vmem [shape: bf16[2,4,16,8], index: 3, kind: output, shape index: {0}]
  %s4 = inlined_call_operand.vmem [shape: bf16[2,4,16,8], index: 4, kind: output, shape index: {1}]
  %s5 = inlined_call_operand.vmem [shape: bf16[2,4,16,8], index: 5, kind: output, shape index: {2}]
  %6 = xla_tuple %s3, %s4, %s5
  %s7 = sld [smem:[#allocation0]]
  $region69: #{tpu_custom_call.1} parent=0
    _
  %s9 = ssub.s32 1, %s7
  %s10 = scalar_select 0, %s9, %s7
  $region1: #{tpu_custom_call.1} parent=0
    #allocation2 [shape = 'u8[16384]{0}', space=vmem, size = 0x4000, scoped, tag = 'input window, operand 0']
    #allocation3 [shape = 's32[2]{0}', space=sflag, size = 0x8, scoped, tag = 'scoped memory for tpu_custom_call.1']
    #allocation4 [shape = 'u8[8192]{0}', space=vmem, size = 0x2000, scoped, tag = 'input window, operand 1, single buffered']
    #allocation5 [shape = 's32[1]{0}', space=sflag, size = 0x4, scoped, tag = 'scoped memory for tpu_custom_call.1']
    %11 = vsyncpa [#allocation3], 0
    %s12 = scalar_lea.sflag [#allocation3], 1
    %13 = vsyncpa %s12, 0
    %14 = vsyncpa [#allocation5], 0
    loop: start=0, step=1, limit=4
    $region2: #{tpu_custom_call.1} parent=1 // loop_pre_header
      _
    $region3: #{tpu_custom_call.1} parent=1 // loop_header
      %s16 = sphi 0, %s20
      %p17 = scmp.ge.s32.totalorder %s16, 4
      %s23 = sphi 0, %s35
      %s24 = sphi 0, %s31
      %s25 = sphi 0, %s23
      %s26 = sphi 0, %s24
      %s27 = sphi 0, %s25
      %s28 = sphi 0, %s26
      %s40 = sphi 0, %s42
      %s43 = sphi 0, %s40
      %s44 = sphi 0, %s43
      %s60 = sphi 0, %s44
      %s64 = sphi 0, %s64
      %s66 = sphi 0, %s64
      %s67 = sphi 0, %s66
      %s81 = sphi 0, %s67
      %s85 = sphi 0, %s85
      %s87 = sphi 0, %s85
      %s88 = sphi 0, %s87
      %s102 = sphi 0, %s88
      %s110 = sphi 0, %s112
      %s113 = sphi 0, %s110
      %s114 = sphi 0, %s113
      %s130 = sphi 0, %s114
      %s138 = sphi 0, %s140
      %s141 = sphi 0, %s138
      %s142 = sphi 0, %s141
      %s158 = sphi 0, %s142
      %s166 = sphi 0, %s168
      %s169 = sphi 0, %s166
      %s170 = sphi 0, %s169
      %s186 = sphi 0, %s170
    $region4: #{tpu_custom_call.1} parent=1 // loop_header_branch
      %19 = sbr.rel (%p17) target = $region8
    $region5: #{tpu_custom_call.1} parent=1 // loop_body
      %s21 = ssub.s32 %s16, 1
      %s22 = ssub.s32 %s16, 2
      %s29 = sadd.s32 1, %s24
      %p30 = scmp.ge.s32.totalorder %s29, 1
      %s31 = scalar_select %p30, 0, %s29
      %s32 = sadd.s32 1, %s23
      %s33 = scalar_select %p30, %s32, %s23
      %p34 = scmp.ge.s32.totalorder %s33, 2
      %s35 = scalar_select %p34, 0, %s33
      %s36 = ssub.s32 %s23, %s35
      %s37 = ssub.s32 %s24, %s31
      %s38 = sor.u32 %s36, %s37
      %p39 = scmp.eq.s32.totalorder %s38, 0
      %s41 = sadd.s32 %s40, 1
      %s42 = scalar_select %p39, %s40, %s41
      %p45 = pneg %p39
      %p46 = scmp.eq.s32.totalorder %s16, 1
      %p47 = por %p45, %p46
      %p48 = scmp.ne.s32.totalorder %s40, %s43
      %p49 = scmp.eq.s32.totalorder %s16, 0
      %p50 = por %p48, %p49
      %p51 = scmp.ne.s32.totalorder %s40, %s43
      %p52 = scmp.eq.s32.totalorder %s21, 1
      %p53 = por %p51, %p52
      %p54 = scmp.ne.s32.totalorder %s43, %s44
      %p55 = scmp.eq.s32.totalorder %s21, 0
      %p56 = por %p54, %p55
      %p57 = scmp.ne.s32.totalorder %s43, %s44
      %p58 = scmp.eq.s32.totalorder %s22, 1
      %p59 = por %p57, %p58
      %p61 = scmp.ne.s32.totalorder %s44, %s60
      %p62 = scmp.eq.s32.totalorder %s22, 0
      %p63 = por %p61, %p62
      %s65 = sadd.s32 %s64, 1
      %p68 = scmp.eq.s32.totalorder %s16, 1
      %p69 = scmp.ne.s32.totalorder %s64, %s66
      %p70 = scmp.eq.s32.totalorder %s16, 0
      %p71 = por %p69, %p70
      %p72 = scmp.ne.s32.totalorder %s64, %s66
      %p73 = scmp.eq.s32.totalorder %s21, 1
      %p74 = por %p72, %p73
      %p75 = scmp.ne.s32.totalorder %s66, %s67
      %p76 = scmp.eq.s32.totalorder %s21, 0
      %p77 = por %p75, %p76
      %p78 = scmp.ne.s32.totalorder %s66, %s67
      %p79 = scmp.eq.s32.totalorder %s22, 1
      %p80 = por %p78, %p79
      %p82 = scmp.ne.s32.totalorder %s67, %s81
      %p83 = scmp.eq.s32.totalorder %s22, 0
      %p84 = por %p82, %p83
      %s86 = sadd.s32 %s85, 1
      %p89 = scmp.eq.s32.totalorder %s16, 1
      %p90 = scmp.ne.s32.totalorder %s85, %s87
      %p91 = scmp.eq.s32.totalorder %s16, 0
      %p92 = por %p90, %p91
      %p93 = scmp.ne.s32.totalorder %s85, %s87
      %p94 = scmp.eq.s32.totalorder %s21, 1
      %p95 = por %p93, %p94
      %p96 = scmp.ne.s32.totalorder %s87, %s88
      %p97 = scmp.eq.s32.totalorder %s21, 0
      %p98 = por %p96, %p97
      %p99 = scmp.ne.s32.totalorder %s87, %s88
      %p100 = scmp.eq.s32.totalorder %s22, 1
      %p101 = por %p99, %p100
      %p103 = scmp.ne.s32.totalorder %s88, %s102
      %p104 = scmp.eq.s32.totalorder %s22, 0
      %p105 = por %p103, %p104
      %s106 = ssub.s32 %s23, %s35
      %s107 = ssub.s32 %s24, %s31
      %s108 = sor.u32 %s106, %s107
      %p109 = scmp.eq.s32.totalorder %s108, 0
      %s111 = sadd.s32 %s110, 1
      %s112 = scalar_select %p109, %s110, %s111
      %p115 = pneg %p109
      %p116 = scmp.eq.s32.totalorder %s16, 1
      %p117 = por %p115, %p116
      %p118 = scmp.ne.s32.totalorder %s110, %s113
      %p119 = scmp.eq.s32.totalorder %s16, 0
      %p120 = por %p118, %p119
      %p121 = scmp.ne.s32.totalorder %s110, %s113
      %p122 = scmp.eq.s32.totalorder %s21, 1
      %p123 = por %p121, %p122
      %p124 = scmp.ne.s32.totalorder %s113, %s114
      %p125 = scmp.eq.s32.totalorder %s21, 0
      %p126 = por %p124, %p125
      %p127 = scmp.ne.s32.totalorder %s113, %s114
      %p128 = scmp.eq.s32.totalorder %s22, 1
      %p129 = por %p127, %p128
      %p131 = scmp.ne.s32.totalorder %s114, %s130
      %p132 = scmp.eq.s32.totalorder %s22, 0
      %p133 = por %p131, %p132
      %s134 = ssub.s32 %s23, %s35
      %s135 = ssub.s32 %s24, %s31
      %s136 = sor.u32 %s134, %s135
      %p137 = scmp.eq.s32.totalorder %s136, 0
      %s139 = sadd.s32 %s138, 1
      %s140 = scalar_select %p137, %s138, %s139
      %p143 = pneg %p137
      %p144 = scmp.eq.s32.totalorder %s16, 1
      %p145 = por %p143, %p144
      %p146 = scmp.ne.s32.totalorder %s138, %s141
      %p147 = scmp.eq.s32.totalorder %s16, 0
      %p148 = por %p146, %p147
      %p149 = scmp.ne.s32.totalorder %s138, %s141
      %p150 = scmp.eq.s32.totalorder %s21, 1
      %p151 = por %p149, %p150
      %p152 = scmp.ne.s32.totalorder %s141, %s142
      %p153 = scmp.eq.s32.totalorder %s21, 0
      %p154 = por %p152, %p153
      %p155 = scmp.ne.s32.totalorder %s141, %s142
      %p156 = scmp.eq.s32.totalorder %s22, 1
      %p157 = por %p155, %p156
      %p159 = scmp.ne.s32.totalorder %s142, %s158
      %p160 = scmp.eq.s32.totalorder %s22, 0
      %p161 = por %p159, %p160
      %s162 = ssub.s32 %s23, %s35
      %s163 = ssub.s32 %s24, %s31
      %s164 = sor.u32 %s162, %s163
      %p165 = scmp.eq.s32.totalorder %s164, 0
      %s167 = sadd.s32 %s166, 1
      %s168 = scalar_select %p165, %s166, %s167
      %p171 = pneg %p165
      %p172 = scmp.eq.s32.totalorder %s16, 1
      %p173 = por %p171, %p172
      %p174 = scmp.ne.s32.totalorder %s166, %s169
      %p175 = scmp.eq.s32.totalorder %s16, 0
      %p176 = por %p174, %p175
      %p177 = scmp.ne.s32.totalorder %s166, %s169
      %p178 = scmp.eq.s32.totalorder %s21, 1
      %p179 = por %p177, %p178
      %p180 = scmp.ne.s32.totalorder %s169, %s170
      %p181 = scmp.eq.s32.totalorder %s21, 0
      %p182 = por %p180, %p181
      %p183 = scmp.ne.s32.totalorder %s169, %s170
      %p184 = scmp.eq.s32.totalorder %s22, 1
      %p185 = por %p183, %p184
      %p187 = scmp.ne.s32.totalorder %s170, %s186
      %p188 = scmp.eq.s32.totalorder %s22, 0
      %p189 = por %p187, %p188
      %p190 = scmp.le.s32.totalorder 1, %s16
      %p191 = scmp.lt.s32.totalorder %s16, 3
      %p192 = pnand %p190, %p191
      %p193 = pneg %p192
      // Predicated region
      $region9: #{tpu_custom_call.1} parent=5 // pred_check
        _
      $region10: #{tpu_custom_call.1} parent=5 // pred_check_branch
        %195 = sbr.rel (%p192) target = $region12
      $region11: #{tpu_custom_call.1} parent=5 // pred_region
        %s196 = ssub.s32 %s16, 1
        // Predicated region
        $region13: #{tpu_custom_call.1} parent=11 // pred_check
          %p197 = pneg %p77
        $region14: #{tpu_custom_call.1} parent=11 // pred_check_branch
          %199 = sbr.rel (%p197) target = $region16
        $region15: #{tpu_custom_call.1} parent=11 // pred_region
          %s201 = ssub.s32 256, 256
          %202 = vsyncadd [#allocation5], %s201
          %s203 = sshll.u32 [#allocation4], 4
          %s204 = int_to_ptr.vmem [resolvable:$true] %s203
          %209 = dma.hbm_to_vmem [thread:$0]  %s1, 256, %s204, [#allocation5], 64, 64, 4
        $region16: #{tpu_custom_call.1} parent=11 // pred_fallthru
          _
        // Predicated region
        $region17: #{tpu_custom_call.1} parent=11 // pred_check
          %p210 = pneg %p98
        $region18: #{tpu_custom_call.1} parent=11 // pred_check_branch
          %212 = sbr.rel (%p210) target = $region20
        $region19: #{tpu_custom_call.1} parent=11 // pred_region
          _
        $region20: #{tpu_custom_call.1} parent=11 // pred_fallthru
          _
      $region12: #{tpu_custom_call.1} parent=5 // pred_fallthru
        _
      %p213 = scmp.lt.s32.totalorder %s16, 2
      // Predicated region
      $region21: #{tpu_custom_call.1} parent=5 // pred_check
        %p214 = pneg %p213
      $region22: #{tpu_custom_call.1} parent=5 // pred_check_branch
        %216 = sbr.rel (%p214) target = $region24
      $region23: #{tpu_custom_call.1} parent=5 // pred_region
        // Predicated region
        $region25: #{tpu_custom_call.1} parent=23 // pred_check
          %p217 = pneg %p50
        $region26: #{tpu_custom_call.1} parent=23 // pred_check_branch
          %219 = sbr.rel (%p217) target = $region28
        $region27: #{tpu_custom_call.1} parent=23 // pred_region
          %s220 = sand.u32 %s40, 1
          %s221 = scalar_lea.sflag [#allocation3], %s220
          %s222 = sand.u32 %s40, 1
          %s223 = smul.addr %s222, 16
          %s224 = scalar_lea.vmem [#allocation2], %s223
          %s225 = smul.u32 2, %s24
          %s227 = ssub.s32 256, 256
          %228 = vsyncadd %s221, %s227
          %s229 = smul.addr %s23, 2
          %s230 = sadd.s32 %s225, %s229
          %s231 = smul.addr %s230, 128
          %s232 = scalar_lea.hbm %s0, %s231
          %s233 = sshll.u32 %s224, 4
          %s234 = int_to_ptr.vmem [resolvable:$true] %s233
          %239 = dma.hbm_to_vmem [thread:$0]  %s232, 256, %s234, %s221, 128, 128, 8
        $region28: #{tpu_custom_call.1} parent=23 // pred_fallthru
          _
      $region24: #{tpu_custom_call.1} parent=5 // pred_fallthru
        _
      %p240 = scmp.le.s32.totalorder 1, %s16
      %p241 = scmp.lt.s32.totalorder %s16, 3
      %p242 = pnand %p240, %p241
      %p243 = pneg %p242
      // Predicated region
      $region29: #{tpu_custom_call.1} parent=5 // pred_check
        _
      $region30: #{tpu_custom_call.1} parent=5 // pred_check_branch
        %245 = sbr.rel (%p242) target = $region32
      $region31: #{tpu_custom_call.1} parent=5 // pred_region
        %s246 = ssub.s32 %s16, 1
        %s247 = sand.u32 %s43, 1
        %s248 = scalar_lea.sflag [#allocation3], %s247
        %s249 = sand.u32 %s43, 1
        %s250 = smul.addr %s249, 16
        %s251 = scalar_lea.vmem [#allocation2], %s250
        // Predicated region
        $region33: #{tpu_custom_call.1} parent=31 // pred_check
          %p252 = pneg %p56
        $region34: #{tpu_custom_call.1} parent=31 // pred_check_branch
          %254 = sbr.rel (%p252) target = $region36
        $region35: #{tpu_custom_call.1} parent=31 // pred_region
          %255 = dma.done %s248, 256
        $region36: #{tpu_custom_call.1} parent=31 // pred_fallthru
          _
        // Predicated region
        $region37: #{tpu_custom_call.1} parent=31 // pred_check
          %p256 = pneg %p77
        $region38: #{tpu_custom_call.1} parent=31 // pred_check_branch
          %258 = sbr.rel (%p256) target = $region40
        $region39: #{tpu_custom_call.1} parent=31 // pred_region
          %259 = dma.done [#allocation5], 256
        $region40: #{tpu_custom_call.1} parent=31 // pred_fallthru
          _
        %s260 = sand.u32 %s43, 1
        %s261 = scalar_lea.sflag [#allocation3], %s260
        %s262 = sand.u32 %s43, 1
        %s263 = smul.addr %s262, 16
        %s264 = scalar_lea.vmem [#allocation2], %s263
        %p265 = pneg %p56
        %p266 = pneg %p53
        %p267 = pneg %p77
        %p268 = pneg %p74
        %p269 = pneg %p98
        %p270 = pneg %p95
        %p271 = pneg %p126
        %p272 = pneg %p123
        %s273 = smul.u32 2, %s26
        %p274 = scmp.lt.s32.totalorder %s25, 1
        %s275 = scalar_select %p274, %s25, 1
        %p276 = scmp.lt.s32.totalorder %s273, 1
        %s277 = scalar_select %p276, %s273, 1
        %s278 = smul.addr %s275, 8
        %s279 = sadd.s32 %s277, %s278
        %s280 = smul.addr %s279, 4
        %s281 = scalar_lea.vmem %s3, %s280
        %p282 = pneg %p154
        %p283 = pneg %p151
        %s284 = smul.u32 2, %s26
        %p285 = scmp.lt.s32.totalorder %s25, 1
        %s286 = scalar_select %p285, %s25, 1
        %p287 = scmp.lt.s32.totalorder %s284, 1
        %s288 = scalar_select %p287, %s284, 1
        %s289 = smul.addr %s286, 8
        %s290 = sadd.s32 %s288, %s289
        %s291 = smul.addr %s290, 4
        %s292 = scalar_lea.vmem %s4, %s291
        %p293 = pneg %p182
        %p294 = pneg %p179
        %s295 = smul.u32 2, %s26
        %p296 = scmp.lt.s32.totalorder %s25, 1
        %s297 = scalar_select %p296, %s25, 1
        %p298 = scmp.lt.s32.totalorder %s295, 1
        %s299 = scalar_select %p298, %s295, 1
        %s300 = smul.addr %s297, 8
        %s301 = sadd.s32 %s299, %s300
        %s302 = smul.addr %s301, 4
        %s303 = scalar_lea.vmem %s5, %s302
        %s304 = smul.u32 2, %s26
        %s305 = smul.u32 2, %s26
        %p306 = scmp.lt.s32.totalorder %s25, 1
        %s307 = scalar_select %p306, %s25, 1
        %p308 = scmp.lt.s32.totalorder %s305, 1
        %s309 = scalar_select %p308, %s305, 1
        %s310 = smul.addr %s307, 8
        %s311 = sadd.s32 %s309, %s310
        %s312 = smul.addr %s311, 4
        %s313 = scalar_lea.vmem %s3, %s312
        %s314 = smul.u32 2, %s26
        %s315 = smul.u32 2, %s26
        %p316 = scmp.lt.s32.totalorder %s25, 1
        %s317 = scalar_select %p316, %s25, 1
        %p318 = scmp.lt.s32.totalorder %s315, 1
        %s319 = scalar_select %p318, %s315, 1
        %s320 = smul.addr %s317, 8
        %s321 = sadd.s32 %s319, %s320
        %s322 = smul.addr %s321, 4
        %s323 = scalar_lea.vmem %s4, %s322
        %s324 = smul.u32 2, %s26
        %s325 = smul.u32 2, %s26
        %p326 = scmp.lt.s32.totalorder %s25, 1
        %s327 = scalar_select %p326, %s25, 1
        %p328 = scmp.lt.s32.totalorder %s325, 1
        %s329 = scalar_select %p328, %s325, 1
        %s330 = smul.addr %s327, 8
        %s331 = sadd.s32 %s329, %s330
        %s332 = smul.addr %s331, 4
        %s333 = scalar_lea.vmem %s5, %s332
        %s334 = smul.u32 2, %s26
        %v336 = vld [vmem:[%s251] sm:$0xff]
        %v337 = vld [vmem:[%s251 + $0x8] sm:$0xff]
        %v338 = vpack.c.bf16 %v337, %v336
        %v339 = vld [vmem:[#allocation4] sm:$0xf]
        %v340 = vld [vmem:[#allocation4 + $0x4] sm:$0xf]
        %v341 = vld [vmem:[#allocation4 + $0x8] sm:$0xf]
        %v342 = vld [vmem:[#allocation4 + $0xc] sm:$0xf]
        %v343 = vld [vmem:[%s2] sm:$0x1]
        %v345 = vlaneseq
        %v346 = vshrl.u32 %v345, 7
        %v347 = vsub.s32 0, %v346
        %v348 = vrot.slane %v343, %v347
        %v354 = vunpack.c.l.b16 %v339
        %v355 = vunpack.c.l.b16 %v340
        %v356 = vunpack.c.l.b16 %v341
        %v357 = vunpack.c.l.b16 %v342
        %v358 = vpack.c.b16 %v355, %v354
        %v359 = vpack.c.b16 %v357, %v356
        %vm362 = vcmask 261120
        %v364 = vsel %vm362, %v338, 0
        %366 = vmatprep.subr.bf16.mxu0 0
        %367 = vmatpush1.bf16.msra.mxu0 0
        %368 = vmatprep.subr.bf16.mxu0 0
        %369 = vmatpush1.bf16.msra.mxu0 0
        %370 = vmatprep.subr.bf16.mxu0 0
        %371 = vmatpush1.bf16.msra.mxu0 0
        %372 = vmatprep.subr.bf16.mxu0 0
        %373 = vmatpush1.bf16.msra.mxu0 0
        %374 = vmatprep.subr.bf16.mxu0 0
        %375 = vmatpush1.bf16.msra.mxu0 0
        %376 = vmatprep.subr.bf16.mxu0 0
        %377 = vmatpush1.bf16.msra.mxu0 0
        %378 = vmatprep.subr.bf16.mxu0 0
        %379 = vmatpush1.bf16.msra.mxu0 %v359
        %380 = vmatprep.subr.bf16.mxu0 0
        %381 = vmatpush1.bf16.msra.mxu0 %v358
        %382 = vmatprep.subr.bf16.mxu0 0
        %383 = vmatpush2.bf16.msra.mxu0 0
        %384 = vmatprep.subr.bf16.mxu0 0
        %385 = vmatpush2.bf16.msra.mxu0 0
        %386 = vmatprep.subr.bf16.mxu0 0
        %387 = vmatpush2.bf16.msra.mxu0 0
        %388 = vmatprep.subr.bf16.mxu0 0
        %389 = vmatpush2.bf16.msra.mxu0 0
        %390 = vmatprep.subr.bf16.mxu0 0
        %391 = vmatpush2.bf16.msra.mxu0 0
        %392 = vmatprep.subr.bf16.mxu0 0
        %393 = vmatpush2.bf16.msra.mxu0 0
        %394 = vmatprep.subr.bf16.mxu0 0
        %395 = vmatpush2.bf16.msra.mxu0 0
        %396 = vmatprep.subr.bf16.mxu0 0
        %397 = vmatpush2.bf16.msra.mxu0 0
        %398 = vmatprep.mubr.bf16.mxu0 0
        %399 = vmatmul.mubr.bf16.gmra.mxu0 %v364
        %v400 = vpop.f32.mrf.mxu0
        %v401 = vadd.f32 %v348, %v400
        %v402 = vpop.f32.mrf.mxu0
        %v403 = vpop.f32.mrf.mxu0
        %v404 = vadd.f32 %v348, %v403
        %v405 = vpop.f32.mrf.mxu0
        %406 = vdwg.mxu0
        %v407 = vpack.c.bf16 %v404, %v401
        %v409 = vunpack.c.l.b16 %v407
        %v410 = vunpack.c.h.b16 %v407
        %v411 = vpack.c.b16 %v409, %v409
        %v412 = vpack.c.b16 %v410, %v410
        %vm415 = vcmask 60416
        %416 = vst.msk [vmem:[%s313] sm:$0xf] %vm415, %v411
        %417 = vst.msk [vmem:[%s313 + $0x4] sm:$0xf] %vm415, %v412
        %418 = vrot.lane.b32.xlu0 %v411, 96
        %v419 = vpop.permute.xlu0 %418
        %420 = vrot.lane.b32.xlu0 %v412, 96
        %v421 = vpop.permute.xlu0 %420
        %424 = vst.msk [vmem:[%s323] sm:$0xf] %vm415, %v419
        %425 = vst.msk [vmem:[%s323 + $0x4] sm:$0xf] %vm415, %v421
        %426 = vrot.lane.b32.xlu0 %v411, 64
        %v427 = vpop.permute.xlu0 %426
        %428 = vrot.lane.b32.xlu0 %v412, 64
        %v429 = vpop.permute.xlu0 %428
        %432 = vst.msk [vmem:[%s333] sm:$0xf] %vm415, %v427
        %433 = vst.msk [vmem:[%s333 + $0x4] sm:$0xf] %vm415, %v429
        %434 = vrot.lane.b32.xlu0 %v411, 120
        %v435 = vpop.permute.xlu0 %434
        %436 = vrot.lane.b32.xlu0 %v412, 120
        %v437 = vpop.permute.xlu0 %436
        %s440 = scalar_lea.vmem %s313, 8
        %441 = vst.msk [vmem:[%s440] sm:$0xf] %vm415, %v435
        %442 = vst.msk [vmem:[%s440 + $0x4] sm:$0xf] %vm415, %v437
        %443 = vrot.lane.b32.xlu0 %v411, 88
        %v444 = vpop.permute.xlu0 %443
        %445 = vrot.lane.b32.xlu0 %v412, 88
        %v446 = vpop.permute.xlu0 %445
        %s449 = scalar_lea.vmem %s323, 8
        %450 = vst.msk [vmem:[%s449] sm:$0xf] %vm415, %v444
        %451 = vst.msk [vmem:[%s449 + $0x4] sm:$0xf] %vm415, %v446
        %452 = vrot.lane.b32.xlu0 %v411, 56
        %v453 = vpop.permute.xlu0 %452
        %454 = vrot.lane.b32.xlu0 %v412, 56
        %v455 = vpop.permute.xlu0 %454
        %s458 = scalar_lea.vmem %s333, 8
        %459 = vst.msk [vmem:[%s458] sm:$0xf] %vm415, %v453
        %460 = vst.msk [vmem:[%s458 + $0x4] sm:$0xf] %vm415, %v455
        %461 = vrot.lane.b32.xlu0 %v411, 112
        %v462 = vpop.permute.xlu0 %461
        %463 = vrot.lane.b32.xlu0 %v412, 112
        %v464 = vpop.permute.xlu0 %463
        %s467 = scalar_lea.vmem %s313, 16
        %468 = vst.msk [vmem:[%s467] sm:$0xf] %vm415, %v462
        %469 = vst.msk [vmem:[%s467 + $0x4] sm:$0xf] %vm415, %v464
        %470 = vrot.lane.b32.xlu0 %v411, 80
        %v471 = vpop.permute.xlu0 %470
        %472 = vrot.lane.b32.xlu0 %v412, 80
        %v473 = vpop.permute.xlu0 %472
        %s476 = scalar_lea.vmem %s323, 16
        %477 = vst.msk [vmem:[%s476] sm:$0xf] %vm415, %v471
        %478 = vst.msk [vmem:[%s476 + $0x4] sm:$0xf] %vm415, %v473
        %479 = vrot.lane.b32.xlu0 %v411, 48
        %v480 = vpop.permute.xlu0 %479
        %481 = vrot.lane.b32.xlu0 %v412, 48
        %v482 = vpop.permute.xlu0 %481
        %s485 = scalar_lea.vmem %s333, 16
        %486 = vst.msk [vmem:[%s485] sm:$0xf] %vm415, %v480
        %487 = vst.msk [vmem:[%s485 + $0x4] sm:$0xf] %vm415, %v482
        %488 = vrot.lane.b32.xlu0 %v411, 104
        %v489 = vpop.permute.xlu0 %488
        %490 = vrot.lane.b32.xlu0 %v412, 104
        %v491 = vpop.permute.xlu0 %490
        %s494 = scalar_lea.vmem %s313, 24
        %495 = vst.msk [vmem:[%s494] sm:$0xf] %vm415, %v489
        %496 = vst.msk [vmem:[%s494 + $0x4] sm:$0xf] %vm415, %v491
        %497 = vrot.lane.b32.xlu0 %v411, 72
        %v498 = vpop.permute.xlu0 %497
        %499 = vrot.lane.b32.xlu0 %v412, 72
        %v500 = vpop.permute.xlu0 %499
        %s503 = scalar_lea.vmem %s323, 24
        %504 = vst.msk [vmem:[%s503] sm:$0xf] %vm415, %v498
        %505 = vst.msk [vmem:[%s503 + $0x4] sm:$0xf] %vm415, %v500
        %506 = vrot.lane.b32.xlu0 %v411, 40
        %v507 = vpop.permute.xlu0 %506
        %508 = vrot.lane.b32.xlu0 %v412, 40
        %v509 = vpop.permute.xlu0 %508
        %s512 = scalar_lea.vmem %s333, 24
        %513 = vst.msk [vmem:[%s512] sm:$0xf] %vm415, %v507
        %514 = vst.msk [vmem:[%s512 + $0x4] sm:$0xf] %vm415, %v509
        %s515 = smul.u32 2, %s26
        %p516 = scmp.lt.s32.totalorder %s25, 1
        %s517 = scalar_select %p516, %s25, 1
        %p518 = scmp.lt.s32.totalorder %s515, 1
        %s519 = scalar_select %p518, %s515, 1
        %s520 = smul.addr %s517, 8
        %s521 = sadd.s32 %s519, %s520
        %s522 = smul.addr %s521, 4
        %s523 = scalar_lea.vmem %s3, %s522
        %s524 = smul.u32 2, %s26
        %p525 = scmp.lt.s32.totalorder %s25, 1
        %s526 = scalar_select %p525, %s25, 1
        %p527 = scmp.lt.s32.totalorder %s524, 1
        %s528 = scalar_select %p527, %s524, 1
        %s529 = smul.addr %s526, 8
        %s530 = sadd.s32 %s528, %s529
        %s531 = smul.addr %s530, 4
        %s532 = scalar_lea.vmem %s4, %s531
        %s533 = smul.u32 2, %s26
        %p534 = scmp.lt.s32.totalorder %s25, 1
        %s535 = scalar_select %p534, %s25, 1
        %p536 = scmp.lt.s32.totalorder %s533, 1
        %s537 = scalar_select %p536, %s533, 1
        %s538 = smul.addr %s535, 8
        %s539 = sadd.s32 %s537, %s538
        %s540 = smul.addr %s539, 4
        %s541 = scalar_lea.vmem %s5, %s540
        // Predicated region
        $region41: #{tpu_custom_call.1} parent=31 // pred_check
          %p542 = pneg %p123
        $region42: #{tpu_custom_call.1} parent=31 // pred_check_branch
          %544 = sbr.rel (%p542) target = $region44
        $region43: #{tpu_custom_call.1} parent=31 // pred_region
          %s545 = smul.u32 2, %s26
        $region44: #{tpu_custom_call.1} parent=31 // pred_fallthru
          _
        // Predicated region
        $region45: #{tpu_custom_call.1} parent=31 // pred_check
          %p546 = pneg %p151
        $region46: #{tpu_custom_call.1} parent=31 // pred_check_branch
          %548 = sbr.rel (%p546) target = $region48
        $region47: #{tpu_custom_call.1} parent=31 // pred_region
          %s549 = smul.u32 2, %s26
        $region48: #{tpu_custom_call.1} parent=31 // pred_fallthru
          _
        // Predicated region
        $region49: #{tpu_custom_call.1} parent=31 // pred_check
          %p550 = pneg %p179
        $region50: #{tpu_custom_call.1} parent=31 // pred_check_branch
          %552 = sbr.rel (%p550) target = $region52
        $region51: #{tpu_custom_call.1} parent=31 // pred_region
          %s553 = smul.u32 2, %s26
        $region52: #{tpu_custom_call.1} parent=31 // pred_fallthru
          _
      $region32: #{tpu_custom_call.1} parent=5 // pred_fallthru
        _
      %p554 = scmp.le.s32.totalorder 2, %s16
      // Predicated region
      $region53: #{tpu_custom_call.1} parent=5 // pred_check
        %p555 = pneg %p554
      $region54: #{tpu_custom_call.1} parent=5 // pred_check_branch
        %557 = sbr.rel (%p555) target = $region56
      $region55: #{tpu_custom_call.1} parent=5 // pred_region
        %s558 = ssub.s32 %s16, 2
        // Predicated region
        $region57: #{tpu_custom_call.1} parent=55 // pred_check
          %p559 = pneg %p129
        $region58: #{tpu_custom_call.1} parent=55 // pred_check_branch
          %561 = sbr.rel (%p559) target = $region60
        $region59: #{tpu_custom_call.1} parent=55 // pred_region
          %s562 = smul.u32 2, %s28
          %p563 = scmp.lt.s32.totalorder %s27, 1
          %s564 = scalar_select %p563, %s27, 1
          %p565 = scmp.lt.s32.totalorder %s562, 1
          %s566 = scalar_select %p565, %s562, 1
          %s567 = smul.addr %s564, 8
          %s568 = sadd.s32 %s566, %s567
          %s569 = smul.addr %s568, 4
          %s570 = scalar_lea.vmem %s3, %s569
        $region60: #{tpu_custom_call.1} parent=55 // pred_fallthru
          _
        // Predicated region
        $region61: #{tpu_custom_call.1} parent=55 // pred_check
          %p571 = pneg %p157
        $region62: #{tpu_custom_call.1} parent=55 // pred_check_branch
          %573 = sbr.rel (%p571) target = $region64
        $region63: #{tpu_custom_call.1} parent=55 // pred_region
          %s574 = smul.u32 2, %s28
          %p575 = scmp.lt.s32.totalorder %s27, 1
          %s576 = scalar_select %p575, %s27, 1
          %p577 = scmp.lt.s32.totalorder %s574, 1
          %s578 = scalar_select %p577, %s574, 1
          %s579 = smul.addr %s576, 8
          %s580 = sadd.s32 %s578, %s579
          %s581 = smul.addr %s580, 4
          %s582 = scalar_lea.vmem %s4, %s581
        $region64: #{tpu_custom_call.1} parent=55 // pred_fallthru
          _
        // Predicated region
        $region65: #{tpu_custom_call.1} parent=55 // pred_check
          %p583 = pneg %p185
        $region66: #{tpu_custom_call.1} parent=55 // pred_check_branch
          %585 = sbr.rel (%p583) target = $region68
        $region67: #{tpu_custom_call.1} parent=55 // pred_region
          %s586 = smul.u32 2, %s28
          %p587 = scmp.lt.s32.totalorder %s27, 1
          %s588 = scalar_select %p587, %s27, 1
          %p589 = scmp.lt.s32.totalorder %s586, 1
          %s590 = scalar_select %p589, %s586, 1
          %s591 = smul.addr %s588, 8
          %s592 = sadd.s32 %s590, %s591
          %s593 = smul.addr %s592, 4
          %s594 = scalar_lea.vmem %s5, %s593
        $region68: #{tpu_custom_call.1} parent=55 // pred_fallthru
          _
      $region56: #{tpu_custom_call.1} parent=5 // pred_fallthru
        _
    $region6: #{tpu_custom_call.1} parent=1 // loop_footer
      %s20 = sadd.s32 1, %s16
    $region7: #{tpu_custom_call.1} parent=1 // loop_footer_branch
      %15 = sbr.rel target = $region3
    $region8: #{tpu_custom_call.1} parent=1 // loop_exit
      _
    %595 = vsyncpa [#allocation3], 1
    %s596 = scalar_lea.sflag [#allocation3], 1
    %597 = vsyncpa %s596, 1
    %598 = vsyncpa [#allocation5], 1

</llo_original>
